<compile_context>
chip_gen: v7x
topology: tpu7x:2x2x1
jax: 0.10.0
libtpu: 0.0.40
codegen_flags: <defaults>
</compile_context>

<pallas_src>
import jax
import jax.numpy as jnp
from jax import lax
from jax.experimental import pallas as pl
from jax.experimental.pallas import tpu as pltpu


_LANE_PERIOD = 384            # lcm(3 coordinates, 128 lanes): tiles start on vertex boundaries
_TARGET_STEP_BYTES = 1 << 20  # ~1 MiB of geometry moved per grid step


def _cdiv(a, b):
    return -(-a // b)


def _round_up(x, m):
    return ((x + m - 1) // m) * m


def project_kernel(pp_ref, geo_ref, out_ref):
    """One grid step = (bt batch rows) x (tw flattened-coordinate lanes).

    pp_ref : VMEM (bt, 12) f32  [r00 r01 r02 r10 r11 r12 r20 r21 r22 tx ty tz]
    geo_ref: VMEM (bt, tw)      flattened geometry [x0, y0, z0, x1, y1, z1, ...]
    out_ref: VMEM (bt, tw)      flattened rotated + translated vertices (same layout)
    """
    r00 = pp_ref[:, 0:1]
    r01 = pp_ref[:, 1:2]
    r02 = pp_ref[:, 2:3]
    r10 = pp_ref[:, 3:4]
    r11 = pp_ref[:, 4:5]
    r12 = pp_ref[:, 5:6]
    r20 = pp_ref[:, 6:7]
    r21 = pp_ref[:, 7:8]
    r22 = pp_ref[:, 8:9]
    tx = pp_ref[:, 9:10]
    ty = pp_ref[:, 10:11]
    tz = pp_ref[:, 11:12]

    # f32 math regardless of the I/O dtype (bf16 path casts on load/store only).
    g = geo_ref[...].astype(jnp.float32)        # (bt, tw)
    tw = g.shape[-1]

    # Lane rotations (XLU).  roll(g, s)[p] == g[(p - s) % tw].  Tiles start at a
    # multiple of 3 and tw % 3 == 0, so wrapped lanes never feed a kept lane.
    g_p1 = pltpu.roll(g, 1, 1)          # g[p - 1]
    g_p2 = pltpu.roll(g, 2, 1)          # g[p - 2]
    g_m1 = pltpu.roll(g, tw - 1, 1)     # g[p + 1]
    g_m2 = pltpu.roll(g, tw - 2, 1)     # g[p + 2]

    # For lane p with phase j = p % 3 (vertex n = p // 3):
    #   out[p] = sum_k geo[3n + k] * R[k, j] + t[j]
    col_x = g * r00 + g_m1 * r10 + g_m2 * r20 + tx      # lanes with phase 0
    col_y = g_p1 * r01 + g * r11 + g_m1 * r21 + ty      # lanes with phase 1
    col_z = g_p2 * r02 + g_p1 * r12 + g * r22 + tz      # lanes with phase 2

    # Lane phase computed in-kernel (no extra input stream / DMA / double buffer).
    phase = lax.broadcasted_iota(jnp.int32, (1, tw), 1) % 3
    res = jnp.where(phase == 0, col_x, jnp.where(phase == 1, col_y, col_z))
    # Single unmasked full-tile store stream.
    out_ref[...] = res.astype(out_ref.dtype)


def project(geometry_graph, pose, *, max_tile_w=6144):
    """geometry_graph: (B, N, 3), pose: (B, 6) -> vertices (B, N, 3).

    Output dtype matches the geometry dtype (bf16 in -> bf16 out, else f32);
    all in-kernel math is f32.
    """
    assert max_tile_w % _LANE_PERIOD == 0 and max_tile_w > 0
    io_dtype = jnp.bfloat16 if geometry_graph.dtype == jnp.bfloat16 else jnp.float32
    geometry_graph = geometry_graph.astype(io_dtype)
    pose = pose.astype(jnp.float32)
    B, N, C = geometry_graph.shape
    assert C == 3 and pose.shape == (B, 6)

    sublane = 16 if io_dtype == jnp.bfloat16 else 8
    itemsize = jnp.dtype(io_dtype).itemsize

    W = 3 * N
    geo_flat = geometry_graph.reshape(B, W)   # contiguous reshape: metadata only

    # ---- width blocking: balanced blocks, every tile width a multiple of 384 ----
    nb_w = max(1, _cdiv(W, max_tile_w))
    tw = _round_up(max(_cdiv(W, nb_w), 1), _LANE_PERIOD)

    # ---- batch blocking: ~1 MiB of geometry per grid step, bt multiple of sublane ----
    if B <= sublane:
        bt = B                                    # full-dim block (always legal)
    else:
        bt_floor = (B // sublane) * sublane       # never exceed the batch extent
        bt_payload = _round_up(max(_cdiv(_TARGET_STEP_BYTES, itemsize * tw), 1), sublane)
        bt = max(sublane, min(bt_payload, 64, bt_floor))
        # balance the batch blocks (avoid a near-empty trailing block)
        bt = min(bt, _round_up(_cdiv(B, _cdiv(B, bt)), sublane))
    grid_b = _cdiv(B, bt)

    # ---- single-tile problems: expose >=2 blocks so v7x's two TCs both work ----
    if grid_b == 1 and nb_w == 1:
        if W >= 4 * _LANE_PERIOD:
            nb_w = 2
            tw = _round_up(_cdiv(W, 2), _LANE_PERIOD)
        elif B >= 2 * sublane:
            bt = _round_up(_cdiv(B, 2), sublane)
            grid_b = _cdiv(B, bt)

    # ---- pad the flattened axis only when a single block exceeds it (tiny meshes) ----
    wp = W
    if tw > W:
        wp = tw
        geo_flat = jnp.pad(geo_flat, ((0, 0), (0, wp - W)))
    grid_w = _cdiv(wp, tw)

    # TODO(synk): per-batch sin/cos + 3x3 rotation compose stays in plain JAX --
    # O(B) scalar transcendentals are not worth a TPU vector kernel; the per-vertex
    # hot path (rotate + translate) is entirely inside the Pallas kernel.
    roll_a, pitch, yaw = pose[:, 0], pose[:, 1], pose[:, 2]
    cr, sr = jnp.cos(roll_a), jnp.sin(roll_a)
    cp, sp = jnp.cos(pitch), jnp.sin(pitch)
    cy, sy = jnp.cos(yaw), jnp.sin(yaw)
    pose_params = jnp.stack(
        [cy * cp, cy * sp * sr - sy * cr, cy * sp * cr + sy * sr,
         sy * cp, sy * sp * sr + cy * cr, sy * sp * cr - cy * sr,
         -sp, cp * sr, cp * cr,
         pose[:, 3], pose[:, 4], pose[:, 5]],
        axis=1).astype(jnp.float32)               # (B, 12): R = Rz@Ry@Rx, then t
    # Pad pose rows so the last ragged batch block never reads OOB pose data.
    bp = grid_b * bt
    if bp != B:
        pose_params = jnp.pad(pose_params, ((0, bp - B), (0, 0)))

    out_flat = pl.pallas_call(
        project_kernel,
        out_shape=jax.ShapeDtypeStruct((B, wp), io_dtype),
        grid=(grid_b, grid_w),
        in_specs=[
            pl.BlockSpec((bt, 12), lambda bi, wi: (bi, 0)),    # rotation + translation
            pl.BlockSpec((bt, tw), lambda bi, wi: (bi, wi)),   # geometry tile
        ],
        out_specs=pl.BlockSpec((bt, tw), lambda bi, wi: (bi, wi)),
        compiler_params=pltpu.CompilerParams(
            dimension_semantics=("parallel", "parallel"),
            vmem_limit_bytes=48 * 1024 * 1024),
        cost_estimate=pl.CostEstimate(
            flops=18 * B * N,
            transcendentals=0,
            bytes_accessed=2 * itemsize * B * W + 48 * B),
    )(pose_params, geo_flat)

    if wp != W:
        out_flat = out_flat[:, :W]
    return out_flat.reshape(B, N, 3)   # contiguous reshape: free


def project_reference(geometry_graph, pose):
    """Pure-JAX replica of the PyTorch forward, for correctness checking."""
    roll_a, pitch, yaw = pose[:, 0], pose[:, 1], pose[:, 2]
    cr, sr = jnp.cos(roll_a), jnp.sin(roll_a)
    cp, sp = jnp.cos(pitch), jnp.sin(pitch)
    cy, sy = jnp.cos(yaw), jnp.sin(yaw)
    z = jnp.zeros_like(cr)
    o = jnp.ones_like(cr)
    Rx = jnp.stack([jnp.stack([o, z, z], -1),
                    jnp.stack([z, cr, -sr], -1),
                    jnp.stack([z, sr, cr], -1)], -2)
    Ry = jnp.stack([jnp.stack([cp, z, sp], -1),
                    jnp.stack([z, o, z], -1),
                    jnp.stack([-sp, z, cp], -1)], -2)
    Rz = jnp.stack([jnp.stack([cy, -sy, z], -1),
                    jnp.stack([sy, cy, z], -1),
                    jnp.stack([z, z, o], -1)], -2)
    R = jnp.einsum('bij,bjk->bik', Rz, jnp.einsum('bij,bjk->bik', Ry, Rx))
    return jnp.einsum('bnk,bkj->bnj', geometry_graph, R) + pose[:, None, 3:]


if __name__ == "__main__":
    key = jax.random.PRNGKey(0)
    k1, k2, k3, k4, k5, k6 = jax.random.split(key, 6)

    # 1) Small demo shape implied by the module: batch of 2 poses, 8 vertices, 3D.
    B, N = 2, 8
    geometry = jax.random.normal(k1, (B, N, 3), dtype=jnp.float32)
    pose = jax.random.normal(k2, (B, 6), dtype=jnp.float32)
    vertices = jax.block_until_ready(project(geometry, pose))
    reference = project_reference(geometry, pose)
    assert vertices.shape == (B, N, 3), vertices.shape
    assert jnp.allclose(vertices, reference, atol=1e-4, rtol=1e-4), (
        "Pallas result does not match reference (small case)")

    # 2) Multi-block width with a ragged (masked) last block AND a ragged batch
    #    block: W=3000 over balanced 1152-lane tiles, B=9 over 8-row tiles.
    B2, N2 = 9, 1000
    geometry2 = jax.random.normal(k3, (B2, N2, 3), dtype=jnp.float32)
    pose2 = jax.random.normal(k4, (B2, 6), dtype=jnp.float32)
    vertices2 = jax.block_until_ready(project(geometry2, pose2, max_tile_w=1152))
    reference2 = project_reference(geometry2, pose2)
    assert jnp.allclose(vertices2, reference2, atol=1e-4, rtol=1e-4), (
        "Pallas result does not match reference (multi-block / ragged case)")

    # 3) Mesh that fits one tile but is split into two width blocks (dual-TC path).
    B3, N3 = 8, 1024
    geometry3 = jax.random.normal(k5, (B3, N3, 3), dtype=jnp.float32)
    pose3 = jax.random.normal(k6, (B3, 6), dtype=jnp.float32)
    vertices3 = jax.block_until_ready(project(geometry3, pose3))
    reference3 = project_reference(geometry3, pose3)
    assert jnp.allclose(vertices3, reference3, atol=1e-4, rtol=1e-4), (
        "Pallas result does not match reference (split single-tile case)")

    # 4) Optional bf16 I/O path (halves HBM bytes; f32 math inside the kernel).
    kb1, kb2 = jax.random.split(jax.random.PRNGKey(7))
    B4, N4 = 4, 500
    geometry4 = jax.random.normal(kb1, (B4, N4, 3), dtype=jnp.float32).astype(jnp.bfloat16)
    pose4 = jax.random.normal(kb2, (B4, 6), dtype=jnp.float32)
    vertices4 = jax.block_until_ready(project(geometry4, pose4))
    reference4 = project_reference(geometry4.astype(jnp.float32), pose4)
    assert vertices4.dtype == jnp.bfloat16
    assert jnp.allclose(vertices4.astype(jnp.float32), reference4, atol=3e-2, rtol=3e-2), (
        "Pallas result does not match reference (bf16 I/O case)")

    print("KERNEL_OK")
</pallas_src>

<mosaic_0001>
module attributes {stable_mosaic.version = 11 : i64} {
  func.func @project_kernel(%arg0: i32, %arg1: i32, %arg2: memref<2x12xf32, #tpu.memory_space<vmem>>, %arg3: memref<2x384xf32, #tpu.memory_space<vmem>>, %arg4: memref<2x384xf32, #tpu.memory_space<vmem>>) attributes {dimension_semantics = [#tpu.dimension_semantics<parallel>, #tpu.dimension_semantics<parallel>], iteration_bounds = array<i64: 1, 1>, scalar_prefetch = 0 : i64, scratch_operands = 0 : i64, tpu.core_type = #tpu.core_type<tc>, window_params = [{transform_indices = @transform_0, window_bounds = array<i64: 2, 12>}, {transform_indices = @transform_1, window_bounds = array<i64: 2, 384>}, {transform_indices = @transform_2, window_bounds = array<i64: 2, 384>}]} {
    %c0 = arith.constant 0 : index
    %c0_0 = arith.constant 0 : index
    %0 = vector.load %arg2[%c0, %c0_0] : memref<2x12xf32, #tpu.memory_space<vmem>>, vector<2x1xf32>
    %c0_1 = arith.constant 0 : index
    %c1 = arith.constant 1 : index
    %1 = vector.load %arg2[%c0_1, %c1] : memref<2x12xf32, #tpu.memory_space<vmem>>, vector<2x1xf32>
    %c0_2 = arith.constant 0 : index
    %c2 = arith.constant 2 : index
    %2 = vector.load %arg2[%c0_2, %c2] : memref<2x12xf32, #tpu.memory_space<vmem>>, vector<2x1xf32>
    %c0_3 = arith.constant 0 : index
    %c3 = arith.constant 3 : index
    %3 = vector.load %arg2[%c0_3, %c3] : memref<2x12xf32, #tpu.memory_space<vmem>>, vector<2x1xf32>
    %c0_4 = arith.constant 0 : index
    %c4 = arith.constant 4 : index
    %4 = vector.load %arg2[%c0_4, %c4] : memref<2x12xf32, #tpu.memory_space<vmem>>, vector<2x1xf32>
    %c0_5 = arith.constant 0 : index
    %c5 = arith.constant 5 : index
    %5 = vector.load %arg2[%c0_5, %c5] : memref<2x12xf32, #tpu.memory_space<vmem>>, vector<2x1xf32>
    %c0_6 = arith.constant 0 : index
    %c6 = arith.constant 6 : index
    %6 = vector.load %arg2[%c0_6, %c6] : memref<2x12xf32, #tpu.memory_space<vmem>>, vector<2x1xf32>
    %c0_7 = arith.constant 0 : index
    %c7 = arith.constant 7 : index
    %7 = vector.load %arg2[%c0_7, %c7] : memref<2x12xf32, #tpu.memory_space<vmem>>, vector<2x1xf32>
    %c0_8 = arith.constant 0 : index
    %c8 = arith.constant 8 : index
    %8 = vector.load %arg2[%c0_8, %c8] : memref<2x12xf32, #tpu.memory_space<vmem>>, vector<2x1xf32>
    %c0_9 = arith.constant 0 : index
    %c9 = arith.constant 9 : index
    %9 = vector.load %arg2[%c0_9, %c9] : memref<2x12xf32, #tpu.memory_space<vmem>>, vector<2x1xf32>
    %c0_10 = arith.constant 0 : index
    %c10 = arith.constant 10 : index
    %10 = vector.load %arg2[%c0_10, %c10] : memref<2x12xf32, #tpu.memory_space<vmem>>, vector<2x1xf32>
    %c0_11 = arith.constant 0 : index
    %c11 = arith.constant 11 : index
    %11 = vector.load %arg2[%c0_11, %c11] : memref<2x12xf32, #tpu.memory_space<vmem>>, vector<2x1xf32>
    %c0_12 = arith.constant 0 : index
    %c0_13 = arith.constant 0 : index
    %12 = vector.load %arg3[%c0_12, %c0_13] : memref<2x384xf32, #tpu.memory_space<vmem>>, vector<2x384xf32>
    %c1_i32 = arith.constant 1 : i32
    %13 = tpu.dynamic_rotate %12 by %c1_i32 dim 1 : vector<2x384xf32>, i32 -> vector<2x384xf32>
    %c2_i32 = arith.constant 2 : i32
    %14 = tpu.dynamic_rotate %12 by %c2_i32 dim 1 : vector<2x384xf32>, i32 -> vector<2x384xf32>
    %c383_i32 = arith.constant 383 : i32
    %15 = tpu.dynamic_rotate %12 by %c383_i32 dim 1 : vector<2x384xf32>, i32 -> vector<2x384xf32>
    %c382_i32 = arith.constant 382 : i32
    %16 = tpu.dynamic_rotate %12 by %c382_i32 dim 1 : vector<2x384xf32>, i32 -> vector<2x384xf32>
    %17 = vector.broadcast %0 : vector<2x1xf32> to vector<2x384xf32>
    %18 = arith.mulf %12, %17 : vector<2x384xf32>
    %19 = vector.broadcast %3 : vector<2x1xf32> to vector<2x384xf32>
    %20 = arith.mulf %15, %19 : vector<2x384xf32>
    %21 = arith.addf %18, %20 : vector<2x384xf32>
    %22 = vector.broadcast %6 : vector<2x1xf32> to vector<2x384xf32>
    %23 = arith.mulf %16, %22 : vector<2x384xf32>
    %24 = arith.addf %21, %23 : vector<2x384xf32>
    %25 = vector.broadcast %9 : vector<2x1xf32> to vector<2x384xf32>
    %26 = arith.addf %24, %25 : vector<2x384xf32>
    %27 = vector.broadcast %1 : vector<2x1xf32> to vector<2x384xf32>
    %28 = arith.mulf %13, %27 : vector<2x384xf32>
    %29 = vector.broadcast %4 : vector<2x1xf32> to vector<2x384xf32>
    %30 = arith.mulf %12, %29 : vector<2x384xf32>
    %31 = arith.addf %28, %30 : vector<2x384xf32>
    %32 = vector.broadcast %7 : vector<2x1xf32> to vector<2x384xf32>
    %33 = arith.mulf %15, %32 : vector<2x384xf32>
    %34 = arith.addf %31, %33 : vector<2x384xf32>
    %35 = vector.broadcast %10 : vector<2x1xf32> to vector<2x384xf32>
    %36 = arith.addf %34, %35 : vector<2x384xf32>
    %37 = vector.broadcast %2 : vector<2x1xf32> to vector<2x384xf32>
    %38 = arith.mulf %14, %37 : vector<2x384xf32>
    %39 = vector.broadcast %5 : vector<2x1xf32> to vector<2x384xf32>
    %40 = arith.mulf %13, %39 : vector<2x384xf32>
    %41 = arith.addf %38, %40 : vector<2x384xf32>
    %42 = vector.broadcast %8 : vector<2x1xf32> to vector<2x384xf32>
    %43 = arith.mulf %12, %42 : vector<2x384xf32>
    %44 = arith.addf %41, %43 : vector<2x384xf32>
    %45 = vector.broadcast %11 : vector<2x1xf32> to vector<2x384xf32>
    %46 = arith.addf %44, %45 : vector<2x384xf32>
    %47 = tpu.iota {dimensions = array<i32: 1>} : vector<1x384xi32>
    %c3_i32 = arith.constant 3 : i32
    %c0_i32 = arith.constant 0 : i32
    %48 = arith.cmpi eq, %c3_i32, %c0_i32 : i32
    %c1_i32_14 = arith.constant 1 : i32
    %49 = arith.select %48, %c1_i32_14, %c3_i32 : i32
    %50 = vector.broadcast %49 : i32 to vector<1x384xi32>
    %51 = arith.remsi %47, %50 : vector<1x384xi32>
    %c0_i32_15 = arith.constant 0 : i32
    %52 = vector.broadcast %c0_i32_15 : i32 to vector<1x384xi32>
    %53 = arith.cmpi ne, %51, %52 : vector<1x384xi32>
    %c0_i32_16 = arith.constant 0 : i32
    %54 = vector.broadcast %c0_i32_16 : i32 to vector<1x384xi32>
    %55 = arith.cmpi slt, %51, %54 : vector<1x384xi32>
    %c0_i32_17 = arith.constant 0 : i32
    %56 = arith.cmpi slt, %49, %c0_i32_17 : i32
    %57 = vector.broadcast %56 : i1 to vector<1x384xi1>
    %58 = vector.broadcast %57 : vector<1x384xi1> to vector<1x384xi1>
    %59 = arith.xori %55, %58 : vector<1x384xi1>
    %60 = arith.andi %59, %53 : vector<1x384xi1>
    %61 = vector.broadcast %49 : i32 to vector<1x384xi32>
    %62 = arith.addi %51, %61 : vector<1x384xi32>
    %63 = arith.select %60, %62, %51 : vector<1x384xi1>, vector<1x384xi32>
    %c0_i32_18 = arith.constant 0 : i32
    %64 = vector.broadcast %c0_i32_18 : i32 to vector<1x384xi32>
    %65 = arith.cmpi eq, %63, %64 : vector<1x384xi32>
    %c1_i32_19 = arith.constant 1 : i32
    %66 = vector.broadcast %c1_i32_19 : i32 to vector<1x384xi32>
    %67 = arith.cmpi eq, %63, %66 : vector<1x384xi32>
    %68 = vector.shape_cast %67 : vector<1x384xi1> to vector<1x384xi1>
    %69 = vector.broadcast %68 : vector<1x384xi1> to vector<2x384xi1>
    %70 = arith.select %69, %36, %46 : vector<2x384xi1>, vector<2x384xf32>
    %71 = vector.shape_cast %65 : vector<1x384xi1> to vector<1x384xi1>
    %72 = vector.broadcast %71 : vector<1x384xi1> to vector<2x384xi1>
    %73 = arith.select %72, %26, %70 : vector<2x384xi1>, vector<2x384xf32>
    %c0_20 = arith.constant 0 : index
    %c0_21 = arith.constant 0 : index
    %74 = vector.load %arg4[%c0_20, %c0_21] : memref<2x384xf32, #tpu.memory_space<vmem>>, vector<2x384xf32>
    tpu.vector_store %arg4[%c0_20, %c0_21], %73 {strides = array<i32>} : memref<2x384xf32, #tpu.memory_space<vmem>>, vector<2x384xf32>,
    return
  }
  func.func @transform_0(%arg0: i32, %arg1: i32) -> (i32, i32) {
    %c0_i32 = arith.constant 0 : i32
    %c0_i32_0 = arith.constant 0 : i32
    return %arg0, %c0_i32 : i32, i32
  }
  func.func @transform_1(%arg0: i32, %arg1: i32) -> (i32, i32) {
    %c0_i32 = arith.constant 0 : i32
    return %arg0, %arg1 : i32, i32
  }
  func.func @transform_2(%arg0: i32, %arg1: i32) -> (i32, i32) {
    %c0_i32 = arith.constant 0 : i32
    return %arg0, %arg1 : i32, i32
  }
}

</mosaic_0001>

<llo_original>
// kernel: tpu_custom_call.1
$region0: #{tpu_custom_call.1}
  #allocation0 [shape = 'u32[]', space=smem, size = 0x4, offset = 0x4, fixed_abs, tag = 'smem constant byte address 0x4 - core index']
  #allocation1 [shape = 'u32[144,128]{1,0:T(1,128)}', space=vmem, size = 0x12000, scoped, tag = 'internal scratch']
  %s0 = inlined_call_operand.hbm [shape: f32[2,12], index: 0, kind: input, shape index: {}]
  %s1 = inlined_call_operand.hbm [shape: f32[2,384], index: 1, kind: input, shape index: {}]
  %s2 = inlined_call_operand.hbm [shape: f32[2,384], index: 2, kind: output, shape index: {}]
  %s3 = sld [smem:[#allocation0]]
  $region26: #{tpu_custom_call.1} parent=0
    _
  %s5 = ssub.s32 1, %s3
  %s6 = scalar_select 0, %s5, %s3
  $region1: #{tpu_custom_call.1} parent=0
    #allocation2 [shape = 'u8[1024]{0}', space=vmem, size = 0x400, scoped, tag = 'input window, operand 0, single buffered']
    #allocation3 [shape = 's32[1]{0}', space=sflag, size = 0x4, scoped, tag = 'scoped memory for tpu_custom_call.1']
    #allocation4 [shape = 's32[1]{0}', space=sflag, size = 0x4, scoped, tag = 'scoped memory for tpu_custom_call.1']
    #allocation5 [shape = 'u8[3072]{0}', space=vmem, size = 0xc00, scoped, tag = 'input window, operand 1, single buffered']
    #allocation6 [shape = 's32[1]{0}', space=sflag, size = 0x4, scoped, tag = 'scoped memory for tpu_custom_call.1']
    #allocation7 [shape = 'u8[3072]{0}', space=vmem, size = 0xc00, scoped, tag = 'output window, operand 0, single buffered']
    %7 = vsyncpa [#allocation3], 0
    %8 = vsyncpa [#allocation6], 0
    %9 = vsyncpa [#allocation4], 0
    // Predicated region
    $region2: #{tpu_custom_call.1} parent=1 // pred_check
      _
    $region3: #{tpu_custom_call.1} parent=1 // pred_check_branch
      %11 = sbr.rel (0) target = $region5
    $region4: #{tpu_custom_call.1} parent=1 // pred_region
      %s13 = ssub.s32 32, 32
      %14 = vsyncadd [#allocation3], %s13
      %s16 = sshll.u32 [#allocation2], 4
      %s17 = int_to_ptr.vmem [resolvable:$true] %s16
      %19 = dma.hbm_to_vmem [thread:$0]  %s0, 32, %s17, [#allocation3]
    $region5: #{tpu_custom_call.1} parent=1 // pred_fallthru
      _
    // Predicated region
    $region6: #{tpu_custom_call.1} parent=1 // pred_check
      _
    $region7: #{tpu_custom_call.1} parent=1 // pred_check_branch
      %21 = sbr.rel (0) target = $region9
    $region8: #{tpu_custom_call.1} parent=1 // pred_region
      %s23 = ssub.s32 96, 96
      %24 = vsyncadd [#allocation6], %s23
      %s26 = sshll.u32 [#allocation5], 4
      %s27 = int_to_ptr.vmem [resolvable:$true] %s26
      %29 = dma.hbm_to_vmem [thread:$0]  %s1, 96, %s27, [#allocation6]
    $region9: #{tpu_custom_call.1} parent=1 // pred_fallthru
      _
    // Predicated region
    $region10: #{tpu_custom_call.1} parent=1 // pred_check
      _
    $region11: #{tpu_custom_call.1} parent=1 // pred_check_branch
      %31 = sbr.rel (0) target = $region13
    $region12: #{tpu_custom_call.1} parent=1 // pred_region
      %32 = dma.done [#allocation3], 32
    $region13: #{tpu_custom_call.1} parent=1 // pred_fallthru
      _
    // Predicated region
    $region14: #{tpu_custom_call.1} parent=1 // pred_check
      _
    $region15: #{tpu_custom_call.1} parent=1 // pred_check_branch
      %34 = sbr.rel (0) target = $region17
    $region16: #{tpu_custom_call.1} parent=1 // pred_region
      %35 = dma.done [#allocation6], 96
    $region17: #{tpu_custom_call.1} parent=1 // pred_fallthru
      _
    %v36 = vld [vmem:[#allocation2] sm:$0x3]
    %v37 = vld [vmem:[#allocation5] sm:$0x3f]
    %v39 = vcombine.high %v37, %v37
    %v41 = vunpack.c.l.s4 1983009808
    %v42 = vunpack.c.0.s8 %v41
    %v43 = vlaneseq
    %v44 = vshrl.u32 %v43, 7
    %v45 = vsub.s32 %v42, %v44
    %v46 = vrot.slane %v37, %v45
    %v48 = vunpack.c.l.s4 1983009808
    %v49 = vunpack.c.0.s8 %v48
    %v50 = vlaneseq
    %v51 = vshrl.u32 %v50, 7
    %v52 = vsub.s32 %v49, %v51
    %v53 = vrot.slane %v39, %v52
    %v54 = vcombine.high %v46, %v46
    %58 = vrot.lane.b32.xlu0 %v46, 1
    %v59 = vpop.permute.xlu0 %58
    %60 = vrot.lane.b32.xlu0 %v54, 1
    %v61 = vpop.permute.xlu0 %60
    %62 = vrot.lane.b32.xlu0 %v53, 1
    %v63 = vpop.permute.xlu0 %62
    %v64 = vlaneseq
    %v65 = vand.u32 %v64, 127
    %vm66 = vcmp.lt.s32.totalorder %v65, 1
    %v67 = vsel %vm66, %v61, %v63
    %v68 = vsel %vm66, %v59, %v61
    %v69 = vsel %vm66, %v63, %v59
    %70 = vrot.lane.b32.xlu0 %v46, 2
    %v71 = vpop.permute.xlu0 %70
    %72 = vrot.lane.b32.xlu0 %v54, 2
    %v73 = vpop.permute.xlu0 %72
    %74 = vrot.lane.b32.xlu0 %v53, 2
    %v75 = vpop.permute.xlu0 %74
    %vm76 = vcmp.lt.s32.totalorder %v65, 2
    %v77 = vsel %vm76, %v73, %v75
    %v78 = vsel %vm76, %v71, %v73
    %v79 = vsel %vm76, %v75, %v71
    %80 = vrot.lane.b32.xlu0 %v46, 127
    %v81 = vpop.permute.xlu0 %80
    %82 = vrot.lane.b32.xlu0 %v54, 127
    %v83 = vpop.permute.xlu0 %82
    %84 = vrot.lane.b32.xlu0 %v53, 127
    %v85 = vpop.permute.xlu0 %84
    %vm86 = vcmp.lt.s32.totalorder %v65, 127
    %v87 = vsel %vm86, %v83, %v85
    %v88 = vsel %vm86, %v81, %v83
    %v89 = vsel %vm86, %v85, %v81
    %90 = vrot.lane.b32.xlu0 %v46, 126
    %v91 = vpop.permute.xlu0 %90
    %92 = vrot.lane.b32.xlu0 %v54, 126
    %v93 = vpop.permute.xlu0 %92
    %94 = vrot.lane.b32.xlu0 %v53, 126
    %v95 = vpop.permute.xlu0 %94
    %vm96 = vcmp.lt.s32.totalorder %v65, 126
    %v97 = vsel %vm96, %v93, %v95
    %v98 = vsel %vm96, %v91, %v93
    %v99 = vsel %vm96, %v95, %v91
    %101 = vset.pattern.permute.xlu0 0
    %102 = vperm.xlu0 %101, %v36
    %v103 = vpop.permute.xlu0 %102
    %v105 = vunpack.c.l.s4 269488144
    %v106 = vunpack.c.0.s8 %v105
    %v107 = vlaneseq
    %v108 = vshrl.u32 %v107, 7
    %v109 = vsub.s32 %v106, %v108
    %v110 = vrot.slane %v103, %v109
    %v112 = vmul.f32 %v37, %v110
    %113 = vset.pattern.permute.xlu0 3
    %114 = vperm.xlu0 %113, %v36
    %v115 = vpop.permute.xlu0 %114
    %v117 = vmul.f32 %v88, %v115
    %v118 = vmul.f32 %v87, %v115
    %v119 = vmul.f32 %v89, %v115
    %v123 = vcombine.low %v117, %v118
    %v125 = vunpack.c.l.s4 1983009808
    %v126 = vunpack.c.0.s8 %v125
    %v127 = vlaneseq
    %v128 = vshrl.u32 %v127, 7
    %v129 = vsub.s32 %v126, %v128
    %v130 = vrot.slane %v123, %v129
    %v132 = vunpack.c.l.s4 1983009808
    %v133 = vunpack.c.0.s8 %v132
    %v134 = vlaneseq
    %v135 = vshrl.u32 %v134, 7
    %v136 = vsub.s32 %v133, %v135
    %v137 = vrot.slane %v119, %v136
    %v138 = vcombine.low %v130, %v137
    %v140 = vadd.f32 %v112, %v138
    %141 = vset.pattern.permute.xlu0 6
    %142 = vperm.xlu0 %141, %v36
    %v143 = vpop.permute.xlu0 %142
    %v145 = vmul.f32 %v98, %v143
    %v146 = vmul.f32 %v97, %v143
    %v147 = vmul.f32 %v99, %v143
    %v151 = vcombine.low %v145, %v146
    %v153 = vunpack.c.l.s4 1983009808
    %v154 = vunpack.c.0.s8 %v153
    %v155 = vlaneseq
    %v156 = vshrl.u32 %v155, 7
    %v157 = vsub.s32 %v154, %v156
    %v158 = vrot.slane %v151, %v157
    %v160 = vunpack.c.l.s4 1983009808
    %v161 = vunpack.c.0.s8 %v160
    %v162 = vlaneseq
    %v163 = vshrl.u32 %v162, 7
    %v164 = vsub.s32 %v161, %v163
    %v165 = vrot.slane %v147, %v164
    %v166 = vcombine.low %v158, %v165
    %v168 = vadd.f32 %v140, %v166
    %169 = vset.pattern.permute.xlu0 9
    %170 = vperm.xlu0 %169, %v36
    %v171 = vpop.permute.xlu0 %170
    %v173 = vunpack.c.l.s4 269488144
    %v174 = vunpack.c.0.s8 %v173
    %v175 = vlaneseq
    %v176 = vshrl.u32 %v175, 7
    %v177 = vsub.s32 %v174, %v176
    %v178 = vrot.slane %v171, %v177
    %v180 = vadd.f32 %v168, %v178
    %181 = vset.pattern.permute.xlu0 1
    %182 = vperm.xlu0 %181, %v36
    %v183 = vpop.permute.xlu0 %182
    %v185 = vmul.f32 %v69, %v183
    %v186 = vmul.f32 %v68, %v183
    %v187 = vmul.f32 %v67, %v183
    %188 = vset.pattern.permute.xlu0 4
    %189 = vperm.xlu0 %188, %v36
    %v190 = vpop.permute.xlu0 %189
    %v192 = vunpack.c.l.s4 269488144
    %v193 = vunpack.c.0.s8 %v192
    %v194 = vlaneseq
    %v195 = vshrl.u32 %v194, 7
    %v196 = vsub.s32 %v193, %v195
    %v197 = vrot.slane %v190, %v196
    %v199 = vmul.f32 %v37, %v197
    %v201 = vcombine.high %v199, %v199
    %v203 = vunpack.c.l.s4 1983009808
    %v204 = vunpack.c.0.s8 %v203
    %v205 = vlaneseq
    %v206 = vshrl.u32 %v205, 7
    %v207 = vsub.s32 %v204, %v206
    %v208 = vrot.slane %v199, %v207
    %v210 = vunpack.c.l.s4 1983009808
    %v211 = vunpack.c.0.s8 %v210
    %v212 = vlaneseq
    %v213 = vshrl.u32 %v212, 7
    %v214 = vsub.s32 %v211, %v213
    %v215 = vrot.slane %v201, %v214
    %v216 = vcombine.high %v208, %v208
    %v220 = vadd.f32 %v185, %v208
    %v221 = vadd.f32 %v186, %v216
    %v222 = vadd.f32 %v187, %v215
    %223 = vset.pattern.permute.xlu0 7
    %224 = vperm.xlu0 %223, %v36
    %v225 = vpop.permute.xlu0 %224
    %v227 = vmul.f32 %v88, %v225
    %v228 = vmul.f32 %v87, %v225
    %v229 = vmul.f32 %v89, %v225
    %v230 = vadd.f32 %v220, %v227
    %v231 = vadd.f32 %v221, %v228
    %v232 = vadd.f32 %v222, %v229
    %233 = vset.pattern.permute.xlu0 10
    %234 = vperm.xlu0 %233, %v36
    %v235 = vpop.permute.xlu0 %234
    %v237 = vadd.f32 %v230, %v235
    %v238 = vadd.f32 %v231, %v235
    %v239 = vadd.f32 %v232, %v235
    %240 = vset.pattern.permute.xlu0 2
    %241 = vperm.xlu0 %240, %v36
    %v242 = vpop.permute.xlu0 %241
    %v244 = vmul.f32 %v79, %v242
    %v245 = vmul.f32 %v78, %v242
    %v246 = vmul.f32 %v77, %v242
    %247 = vset.pattern.permute.xlu0 5
    %248 = vperm.xlu0 %247, %v36
    %v249 = vpop.permute.xlu0 %248
    %v251 = vmul.f32 %v69, %v249
    %v252 = vmul.f32 %v68, %v249
    %v253 = vmul.f32 %v67, %v249
    %v254 = vadd.f32 %v244, %v251
    %v255 = vadd.f32 %v245, %v252
    %v256 = vadd.f32 %v246, %v253
    %257 = vset.pattern.permute.xlu0 8
    %258 = vperm.xlu0 %257, %v36
    %v259 = vpop.permute.xlu0 %258
    %v261 = vunpack.c.l.s4 269488144
    %v262 = vunpack.c.0.s8 %v261
    %v263 = vlaneseq
    %v264 = vshrl.u32 %v263, 7
    %v265 = vsub.s32 %v262, %v264
    %v266 = vrot.slane %v259, %v265
    %v268 = vmul.f32 %v37, %v266
    %v270 = vcombine.high %v268, %v268
    %v272 = vunpack.c.l.s4 1983009808
    %v273 = vunpack.c.0.s8 %v272
    %v274 = vlaneseq
    %v275 = vshrl.u32 %v274, 7
    %v276 = vsub.s32 %v273, %v275
    %v277 = vrot.slane %v268, %v276
    %v279 = vunpack.c.l.s4 1983009808
    %v280 = vunpack.c.0.s8 %v279
    %v281 = vlaneseq
    %v282 = vshrl.u32 %v281, 7
    %v283 = vsub.s32 %v280, %v282
    %v284 = vrot.slane %v270, %v283
    %v285 = vcombine.high %v277, %v277
    %v289 = vadd.f32 %v254, %v277
    %v290 = vadd.f32 %v255, %v285
    %v291 = vadd.f32 %v256, %v284
    %292 = vset.pattern.permute.xlu0 11
    %293 = vperm.xlu0 %292, %v36
    %v294 = vpop.permute.xlu0 %293
    %v296 = vadd.f32 %v289, %v294
    %v297 = vadd.f32 %v290, %v294
    %v298 = vadd.f32 %v291, %v294
    %v299 = vadd.s32 %v65, 128
    %v300 = vadd.s32 %v65, 256
    %vm301 = vcmp.lt.s32.totalorder %v65, 0
    %v302 = vsub.s32 0, %v65
    %v303 = vsel %vm301, %v302, %v65
    %v304 = vmul.u32.u64.compose %v303, 2863311531
    %v305 = vextract.low.u32 %v304
    %v306 = vextract.high.u32 %v304
    %v307 = vshrl.u32 %v306, 1
    %v308 = vmul.u32 %v307, 3
    %v309 = vsub.s32 %v303, %v308
    %v310 = vsub.s32 0, %v309
    %v311 = vsel %vm301, %v310, %v309
    %vm312 = vcmp.lt.s32.totalorder %v299, 0
    %v313 = vsub.s32 0, %v299
    %v314 = vsel %vm312, %v313, %v299
    %v315 = vmul.u32.u64.compose %v314, 2863311531
    %v316 = vextract.low.u32 %v315
    %v317 = vextract.high.u32 %v315
    %v318 = vshrl.u32 %v317, 1
    %v319 = vmul.u32 %v318, 3
    %v320 = vsub.s32 %v314, %v319
    %v321 = vsub.s32 0, %v320
    %v322 = vsel %vm312, %v321, %v320
    %vm323 = vcmp.lt.s32.totalorder %v300, 0
    %v324 = vsub.s32 0, %v300
    %v325 = vsel %vm323, %v324, %v300
    %v326 = vmul.u32.u64.compose %v325, 2863311531
    %v327 = vextract.low.u32 %v326
    %v328 = vextract.high.u32 %v326
    %v329 = vshrl.u32 %v328, 1
    %v330 = vmul.u32 %v329, 3
    %v331 = vsub.s32 %v325, %v330
    %v332 = vsub.s32 0, %v331
    %v333 = vsel %vm323, %v332, %v331
    %vm334 = vcmp.ne.s32.totalorder %v311, 0
    %vm335 = vcmp.ne.s32.totalorder %v322, 0
    %vm336 = vcmp.ne.s32.totalorder %v333, 0
    %vm337 = vcmp.lt.s32.totalorder %v311, 0
    %vm338 = vcmp.lt.s32.totalorder %v322, 0
    %vm339 = vcmp.lt.s32.totalorder %v333, 0
    %vm340 = vmand %vm337, %vm334
    %vm341 = vmand %vm338, %vm335
    %vm342 = vmand %vm339, %vm336
    %v343 = vadd.s32 %v311, 3
    %v344 = vadd.s32 %v322, 3
    %v345 = vadd.s32 %v333, 3
    %v346 = vsel %vm340, %v343, %v311
    %v347 = vsel %vm341, %v344, %v322
    %v348 = vsel %vm342, %v345, %v333
    %vm349 = vcmp.eq.s32.totalorder %v346, 0
    %vm350 = vcmp.eq.s32.totalorder %v347, 0
    %vm351 = vcmp.eq.s32.totalorder %v348, 0
    %vm352 = vcmp.eq.s32.totalorder %v346, 1
    %vm353 = vcmp.eq.s32.totalorder %v347, 1
    %vm354 = vcmp.eq.s32.totalorder %v348, 1
    %v355 = vsel %vm352, 1, 0
    %v356 = vsel %vm353, 1, 0
    %v357 = vsel %vm354, 1, 0
    %vm358 = vcmp.eq.s32.totalorder %v355, 1
    %vm359 = vcmp.eq.s32.totalorder %v356, 1
    %vm360 = vcmp.eq.s32.totalorder %v357, 1
    %v361 = vsel %vm358, %v237, %v296
    %v362 = vsel %vm359, %v238, %v297
    %v363 = vsel %vm360, %v239, %v298
    %v364 = vsel %vm349, 1, 0
    %v365 = vsel %vm350, 1, 0
    %v366 = vsel %vm351, 1, 0
    %vm367 = vcmp.eq.s32.totalorder %v364, 1
    %vm368 = vcmp.eq.s32.totalorder %v365, 1
    %vm369 = vcmp.eq.s32.totalorder %v366, 1
    %v371 = vcombine.high %v180, %v180
    %v373 = vunpack.c.l.s4 1983009808
    %v374 = vunpack.c.0.s8 %v373
    %v375 = vlaneseq
    %v376 = vshrl.u32 %v375, 7
    %v377 = vsub.s32 %v374, %v376
    %v378 = vrot.slane %v180, %v377
    %v380 = vunpack.c.l.s4 1983009808
    %v381 = vunpack.c.0.s8 %v380
    %v382 = vlaneseq
    %v383 = vshrl.u32 %v382, 7
    %v384 = vsub.s32 %v381, %v383
    %v385 = vrot.slane %v371, %v384
    %v386 = vcombine.high %v378, %v378
    %v390 = vsel %vm367, %v378, %v361
    %v391 = vsel %vm368, %v386, %v362
    %v392 = vsel %vm369, %v385, %v363
    %v396 = vcombine.low %v390, %v391
    %v398 = vunpack.c.l.s4 1983009808
    %v399 = vunpack.c.0.s8 %v398
    %v400 = vlaneseq
    %v401 = vshrl.u32 %v400, 7
    %v402 = vsub.s32 %v399, %v401
    %v403 = vrot.slane %v396, %v402
    %v405 = vunpack.c.l.s4 1983009808
    %v406 = vunpack.c.0.s8 %v405
    %v407 = vlaneseq
    %v408 = vshrl.u32 %v407, 7
    %v409 = vsub.s32 %v406, %v408
    %v410 = vrot.slane %v392, %v409
    %v411 = vcombine.low %v403, %v410
    %413 = vst [vmem:[#allocation7] sm:$0x3f] %v411
    // Predicated region
    $region18: #{tpu_custom_call.1} parent=1 // pred_check
      _
    $region19: #{tpu_custom_call.1} parent=1 // pred_check_branch
      %415 = sbr.rel (0) target = $region21
    $region20: #{tpu_custom_call.1} parent=1 // pred_region
      %s417 = ssub.s32 96, 96
      %418 = vsyncadd [#allocation4], %s417
      %s420 = sshll.u32 [#allocation7], 4
      %s421 = int_to_ptr.vmem [resolvable:$true] %s420
      %423 = dma.vmem_to_hbm [thread:$0]  %s421, 96, %s2, [#allocation4]
    $region21: #{tpu_custom_call.1} parent=1 // pred_fallthru
      _
    // Predicated region
    $region22: #{tpu_custom_call.1} parent=1 // pred_check
      _
    $region23: #{tpu_custom_call.1} parent=1 // pred_check_branch
      %425 = sbr.rel (0) target = $region25
    $region24: #{tpu_custom_call.1} parent=1 // pred_region
      %426 = dma.done [#allocation4], 96
    $region25: #{tpu_custom_call.1} parent=1 // pred_fallthru
      _
    %427 = vsyncpa [#allocation3], 1
    %428 = vsyncpa [#allocation6], 1
    %429 = vsyncpa [#allocation4], 1

</llo_original>
